<compile_context>
chip_gen: v5e
topology: v5e:2x2
jax: 0.10.0
libtpu: 0.0.40
codegen_flags: <defaults>
</compile_context>

<pallas_src>
import functools

import numpy as np
import jax
import jax.numpy as jnp
from jax.experimental import pallas as pl
from jax.experimental.pallas import tpu as pltpu


def _round_up(a, b):
    return (a + b - 1) // b * b


def _marginal_mlp_kernel(x_ref, w1_ref, b1_ref, w2_ref, b2_ref,
                         wf_ref, bf_ref, out_ref, *, out_dim):
    """Fused 2x tanh MLP + fused (mu | tril-scattered sigma) head.

    The fused head weight already places columns so that the raw head output is
      lanes [0:D)        mu
      lanes [D:D+D*D)    flattened DxD scale_tril (raw sigma values; diagonal
                         lanes hold the raw pre-softplus sigma diag, zero lanes
                         where the PyTorch scatter leaves zeros)
      remaining lanes    exact zeros
    so the only remaining work is softplus(+1e-6) on the diagonal lanes and a
    single unmasked lane-dense store.
    """
    # a1 = tanh(x @ W1 + b1): bf16 operands, f32 MXU accumulation, f32 elementwise.
    a1 = jnp.tanh(
        jnp.dot(x_ref[...], w1_ref[...], preferred_element_type=jnp.float32)
        + b1_ref[...])
    # a2 = tanh(a1 @ W2 + b2)
    a2 = jnp.tanh(
        jnp.dot(a1.astype(w2_ref.dtype), w2_ref[...],
                preferred_element_type=jnp.float32)
        + b2_ref[...])
    # Fused head: one matmul directly producing the lane-dense output slab.
    raw = (jnp.dot(a2.astype(wf_ref.dtype), wf_ref[...],
                   preferred_element_type=jnp.float32)
           + bf_ref[...])
    # Cholesky diagonal: softplus on the whole slab is EUP work (~free); the
    # diagonal lanes are then selected with a static iota mask.
    sp = jax.nn.softplus(raw) + 1e-6
    lane = jax.lax.broadcasted_iota(jnp.int32, raw.shape, 1)
    is_diag = lane == out_dim                       # tril lane for (0, 0)
    for i in range(1, out_dim):                     # tril lane for (i, i)
        is_diag = is_diag | (lane == out_dim + i * (out_dim + 1))
    # Single unmasked (tile_n, 128) store.
    out_ref[...] = jnp.where(is_diag, sp, raw)


def _fused_head_lane_map(out_dim, sig_dim, slab_w):
    """Static lane -> source-column map implementing the PyTorch tril scatter.

    Source columns index [w_mu | w_sigma | zero-column]; the zero column is the
    sentinel for slab lanes that must stay exactly 0. Faithfully reproduces the
    PyTorch quirk `Sigma[:, ip, :ip-1]`: row ip only receives ip-1 off-diagonal
    entries (column ip-1 of each row stays 0, the last sigma entries are
    unused), so scale_tril is intentionally NOT fully parameterized.
    """
    D, S = out_dim, sig_dim
    src = np.full((slab_w,), D + S, dtype=np.int32)     # sentinel = zero column
    src[:D] = np.arange(D)                              # mu lanes
    for i in range(D):
        src[D + i * D + i] = D + i                      # raw sigma diag lanes
    iv = D
    for ip in range(1, D):
        l = ip - 1
        for j in range(l):
            src[D + ip * D + j] = D + iv + j            # Sigma[:, ip, :ip-1]
        iv += l
    return src


def marginal_network_forward(x, params, out_dim, *, matmul_dtype=jnp.bfloat16):
    """Returns (mu, scale_tril) matching MarginalNetwork.forward semantics."""
    if x.ndim == 1:
        x = x.reshape(1, -1)
    x = x.astype(jnp.float32)
    N, inp_dim = x.shape
    hidden_dim = params["w1"].shape[1]
    sig_dim = out_dim * (out_dim + 1) // 2
    assert params["w_mu"].shape[0] == hidden_dim == 64, (
        "l_mu / l_sigma are hard-coded to 64 input features in the PyTorch module")

    D = out_dim
    slab_w = max(128, _round_up(D + D * D, 128))        # lane-dense output width

    # Fold mu head, sigma head and the static tril scatter into ONE head weight
    # (cheap one-time prep on tiny (64, slab_w) arrays, outside the kernel).
    src = jnp.asarray(_fused_head_lane_map(D, sig_dim, slab_w))
    w_cat = jnp.concatenate(
        [params["w_mu"], params["w_sigma"],
         jnp.zeros((hidden_dim, 1), params["w_mu"].dtype)], axis=1)
    b_cat = jnp.concatenate(
        [params["b_mu"], params["b_sigma"],
         jnp.zeros((1, 1), params["b_mu"].dtype)], axis=1)
    w_fused = jnp.take(w_cat, src, axis=1)              # (64, slab_w)
    b_fused = jnp.take(b_cat, src, axis=1)              # (1, slab_w)

    # bf16 matmul operands (full-rate MXU on v6e/v7x); f32 biases / elementwise.
    w1 = params["w1"].astype(matmul_dtype)
    w2 = params["w2"].astype(matmul_dtype)
    w_fused = w_fused.astype(matmul_dtype)
    b1 = params["b1"].astype(jnp.float32)
    b2 = params["b2"].astype(jnp.float32)
    b_fused = b_fused.astype(jnp.float32)

    # Batch tiling: large tiles amortize per-grid-step overhead; when the batch
    # is big enough, force >=2 grid steps so v7x shards tiles across both TCs.
    n128 = _round_up(max(N, 1), 128)
    tile_n = min(1024, n128)
    if n128 >= 256:
        tile_n = min(tile_n, _round_up(n128 // 2, 128))
    n_pad = _round_up(n128, tile_n)
    x_p = jnp.pad(x, ((0, n_pad - N), (0, 0))).astype(matmul_dtype)
    grid = (n_pad // tile_n,)

    const = lambda i: (0, 0)
    kernel = functools.partial(_marginal_mlp_kernel, out_dim=D)

    slab = pl.pallas_call(
        kernel,
        out_shape=jax.ShapeDtypeStruct((n_pad, slab_w), jnp.float32),
        grid=grid,
        in_specs=[
            pl.BlockSpec((tile_n, inp_dim), lambda i: (i, 0)),   # x tile
            pl.BlockSpec((inp_dim, hidden_dim), const),          # W1 (resident)
            pl.BlockSpec((1, hidden_dim), const),                # b1
            pl.BlockSpec((hidden_dim, hidden_dim), const),       # W2
            pl.BlockSpec((1, hidden_dim), const),                # b2
            pl.BlockSpec((hidden_dim, slab_w), const),           # fused head W
            pl.BlockSpec((1, slab_w), const),                    # fused head b
        ],
        out_specs=pl.BlockSpec((tile_n, slab_w), lambda i: (i, 0)),
        compiler_params=pltpu.CompilerParams(
            dimension_semantics=("parallel",)),      # v7x: shard tiles over 2 TCs
    )(x_p, w1, b1, w2, b2, w_fused, b_fused)

    # Contiguous slices + reshape only (no gather, no slab re-permutation).
    mu = slab[:N, :D]
    scale_tril = slab[:N, D:D + D * D].reshape(N, D, D)
    # TODO(synk): torch.distributions.MultivariateNormal itself has no JAX-array
    # equivalent here; we return its parameters (mu, scale_tril).
    return mu, scale_tril


def init_params(key, inp_dim, hidden_dim, out_dim):
    """Deterministic init mimicking nn.Linear default U(-1/sqrt(fan_in), +)."""
    sig_dim = out_dim * (out_dim + 1) // 2
    ks = jax.random.split(key, 8)

    def lin(kw, kb, fan_in, fan_out):
        bound = 1.0 / np.sqrt(fan_in)
        w = jax.random.uniform(kw, (fan_in, fan_out), jnp.float32, -bound, bound)
        b = jax.random.uniform(kb, (1, fan_out), jnp.float32, -bound, bound)
        return w, b

    w1, b1 = lin(ks[0], ks[1], inp_dim, hidden_dim)
    w2, b2 = lin(ks[2], ks[3], hidden_dim, hidden_dim)
    # l_mu / l_sigma are hard-coded to 64 inputs in the PyTorch module.
    w_mu, b_mu = lin(ks[4], ks[5], 64, out_dim)
    w_sig, b_sig = lin(ks[6], ks[7], 64, sig_dim)
    return dict(w1=w1, b1=b1, w2=w2, b2=b2,
                w_mu=w_mu, b_mu=b_mu, w_sigma=w_sig, b_sigma=b_sig)


def _reference_forward(x, params, out_dim, *, matmul_dtype=jnp.bfloat16):
    """Pure-JAX reference using the same bf16-operand / f32-accumulate math."""
    def dot(a, w):
        return jnp.dot(a.astype(matmul_dtype), w.astype(matmul_dtype),
                       preferred_element_type=jnp.float32)

    a1 = jnp.tanh(dot(x, params["w1"]) + params["b1"])
    a2 = jnp.tanh(dot(a1, params["w2"]) + params["b2"])
    mu = dot(a2, params["w_mu"]) + params["b_mu"]
    sigma = dot(a2, params["w_sigma"]) + params["b_sigma"]
    N = x.shape[0]
    Sigma = jnp.zeros((N, out_dim, out_dim), jnp.float32)
    idx = jnp.arange(out_dim)
    Sigma = Sigma.at[:, idx, idx].set(jax.nn.softplus(sigma[:, :out_dim]) + 1e-6)
    iv = out_dim
    for ip in range(1, out_dim):
        l = ip - 1
        if l > 0:
            Sigma = Sigma.at[:, ip, :ip - 1].set(sigma[:, iv:iv + l])
        iv += l
    return mu, Sigma


if __name__ == "__main__":
    inp_dim, hidden_dim, out_dim, batch = 16, 64, 4, 8

    key = jax.random.PRNGKey(0)
    k_params, k_x = jax.random.split(key)
    params = init_params(k_params, inp_dim, hidden_dim, out_dim)
    x = jax.random.normal(k_x, (batch, inp_dim), jnp.float32)

    mu, scale_tril = marginal_network_forward(x, params, out_dim)
    jax.block_until_ready((mu, scale_tril))

    mu_ref, tril_ref = _reference_forward(x, params, out_dim)
    assert mu.shape == (batch, out_dim)
    assert scale_tril.shape == (batch, out_dim, out_dim)
    assert jnp.allclose(mu, mu_ref, atol=2e-4, rtol=1e-4), "mu mismatch"
    assert jnp.allclose(scale_tril, tril_ref, atol=2e-4, rtol=1e-4), "scale_tril mismatch"

    print("KERNEL_OK")
</pallas_src>

<mosaic_0001>
module attributes {stable_mosaic.version = 11 : i64} {
  func.func @_marginal_mlp_kernel(%arg0: i32, %arg1: memref<128x16xbf16, #tpu.memory_space<vmem>>, %arg2: memref<16x64xbf16, #tpu.memory_space<vmem>>, %arg3: memref<1x64xf32, #tpu.memory_space<vmem>>, %arg4: memref<64x64xbf16, #tpu.memory_space<vmem>>, %arg5: memref<1x64xf32, #tpu.memory_space<vmem>>, %arg6: memref<64x128xbf16, #tpu.memory_space<vmem>>, %arg7: memref<1x128xf32, #tpu.memory_space<vmem>>, %arg8: memref<128x128xf32, #tpu.memory_space<vmem>>) attributes {dimension_semantics = [#tpu.dimension_semantics<parallel>], iteration_bounds = array<i64: 1>, scalar_prefetch = 0 : i64, scratch_operands = 0 : i64, tpu.core_type = #tpu.core_type<tc>, window_params = [{transform_indices = @transform_0, window_bounds = array<i64: 128, 16>}, {pipeline_mode = #tpu.pipeline_mode<synchronous>, transform_indices = @transform_1, window_bounds = array<i64: 16, 64>}, {pipeline_mode = #tpu.pipeline_mode<synchronous>, transform_indices = @transform_2, window_bounds = array<i64: 1, 64>}, {pipeline_mode = #tpu.pipeline_mode<synchronous>, transform_indices = @transform_3, window_bounds = array<i64: 64, 64>}, {pipeline_mode = #tpu.pipeline_mode<synchronous>, transform_indices = @transform_4, window_bounds = array<i64: 1, 64>}, {pipeline_mode = #tpu.pipeline_mode<synchronous>, transform_indices = @transform_5, window_bounds = array<i64: 64, 128>}, {pipeline_mode = #tpu.pipeline_mode<synchronous>, transform_indices = @transform_6, window_bounds = array<i64: 1, 128>}, {transform_indices = @transform_7, window_bounds = array<i64: 128, 128>}]} {
    %c0 = arith.constant 0 : index
    %c0_0 = arith.constant 0 : index
    %0 = vector.load %arg1[%c0, %c0_0] : memref<128x16xbf16, #tpu.memory_space<vmem>>, vector<128x16xbf16>
    %c0_1 = arith.constant 0 : index
    %c0_2 = arith.constant 0 : index
    %1 = vector.load %arg2[%c0_1, %c0_2] : memref<16x64xbf16, #tpu.memory_space<vmem>>, vector<16x64xbf16>
    %cst = arith.constant dense<0.000000e+00> : vector<128x64xf32>
    %2 = tpu.matmul %0, %1, %cst {dimension_numbers = #tpu.dot_dimension_numbers<[1], [0], [0], [1], [0, 0, 1, 1], [], []>} : vector<128x16xbf16>, vector<16x64xbf16>, vector<128x64xf32> -> vector<128x64xf32>
    %c0_3 = arith.constant 0 : index
    %c0_4 = arith.constant 0 : index
    %3 = vector.load %arg3[%c0_3, %c0_4] : memref<1x64xf32, #tpu.memory_space<vmem>>, vector<1x64xf32>
    %4 = vector.broadcast %3 : vector<1x64xf32> to vector<128x64xf32>
    %5 = arith.addf %2, %4 : vector<128x64xf32>
    %6 = math.tanh %5 : vector<128x64xf32>
    %7 = arith.truncf %6 : vector<128x64xf32> to vector<128x64xbf16>
    %c0_5 = arith.constant 0 : index
    %c0_6 = arith.constant 0 : index
    %8 = vector.load %arg4[%c0_5, %c0_6] : memref<64x64xbf16, #tpu.memory_space<vmem>>, vector<64x64xbf16>
    %cst_7 = arith.constant dense<0.000000e+00> : vector<128x64xf32>
    %9 = tpu.matmul %7, %8, %cst_7 {dimension_numbers = #tpu.dot_dimension_numbers<[1], [0], [0], [1], [0, 0, 1, 1], [], []>} : vector<128x64xbf16>, vector<64x64xbf16>, vector<128x64xf32> -> vector<128x64xf32>
    %c0_8 = arith.constant 0 : index
    %c0_9 = arith.constant 0 : index
    %10 = vector.load %arg5[%c0_8, %c0_9] : memref<1x64xf32, #tpu.memory_space<vmem>>, vector<1x64xf32>
    %11 = vector.broadcast %10 : vector<1x64xf32> to vector<128x64xf32>
    %12 = arith.addf %9, %11 : vector<128x64xf32>
    %13 = math.tanh %12 : vector<128x64xf32>
    %14 = arith.truncf %13 : vector<128x64xf32> to vector<128x64xbf16>
    %c0_10 = arith.constant 0 : index
    %c0_11 = arith.constant 0 : index
    %15 = vector.load %arg6[%c0_10, %c0_11] : memref<64x128xbf16, #tpu.memory_space<vmem>>, vector<64x128xbf16>
    %cst_12 = arith.constant dense<0.000000e+00> : vector<128x128xf32>
    %16 = tpu.matmul %14, %15, %cst_12 {dimension_numbers = #tpu.dot_dimension_numbers<[1], [0], [0], [1], [0, 0, 1, 1], [], []>} : vector<128x64xbf16>, vector<64x128xbf16>, vector<128x128xf32> -> vector<128x128xf32>
    %c0_13 = arith.constant 0 : index
    %c0_14 = arith.constant 0 : index
    %17 = vector.load %arg7[%c0_13, %c0_14] : memref<1x128xf32, #tpu.memory_space<vmem>>, vector<1x128xf32>
    %18 = vector.broadcast %17 : vector<1x128xf32> to vector<128x128xf32>
    %19 = arith.addf %16, %18 : vector<128x128xf32>
    %cst_15 = arith.constant 0.000000e+00 : f32
    %20 = vector.broadcast %cst_15 : f32 to vector<128x128xf32>
    %21 = arith.maximumf %19, %20 : vector<128x128xf32>
    %22 = vector.broadcast %cst_15 : f32 to vector<128x128xf32>
    %23 = arith.subf %19, %22 : vector<128x128xf32>
    %24 = arith.cmpf one, %23, %23 : vector<128x128xf32>
    %25 = vector.broadcast %cst_15 : f32 to vector<128x128xf32>
    %26 = arith.addf %19, %25 : vector<128x128xf32>
    %27 = math.absf %23 : vector<128x128xf32>
    %cst_16 = arith.constant 0.000000e+00 : f32
    %28 = vector.broadcast %cst_16 : f32 to vector<128x128xf32>
    %29 = arith.subf %28, %27 : vector<128x128xf32>
    %30 = math.exp %29 : vector<128x128xf32>
    %31 = math.log1p %30 : vector<128x128xf32>
    %32 = arith.addf %21, %31 : vector<128x128xf32>
    %33 = arith.select %24, %26, %32 : vector<128x128xi1>, vector<128x128xf32>
    %cst_17 = arith.constant 9.99999997E-7 : f32
    %34 = vector.broadcast %cst_17 : f32 to vector<128x128xf32>
    %35 = arith.addf %33, %34 : vector<128x128xf32>
    %36 = tpu.iota {dimensions = array<i32: 1>} : vector<128x128xi32>
    %c4_i32 = arith.constant 4 : i32
    %37 = vector.broadcast %c4_i32 : i32 to vector<128x128xi32>
    %38 = arith.cmpi eq, %36, %37 : vector<128x128xi32>
    %c9_i32 = arith.constant 9 : i32
    %39 = vector.broadcast %c9_i32 : i32 to vector<128x128xi32>
    %40 = arith.cmpi eq, %36, %39 : vector<128x128xi32>
    %41 = arith.ori %38, %40 : vector<128x128xi1>
    %c14_i32 = arith.constant 14 : i32
    %42 = vector.broadcast %c14_i32 : i32 to vector<128x128xi32>
    %43 = arith.cmpi eq, %36, %42 : vector<128x128xi32>
    %44 = arith.ori %41, %43 : vector<128x128xi1>
    %c19_i32 = arith.constant 19 : i32
    %45 = vector.broadcast %c19_i32 : i32 to vector<128x128xi32>
    %46 = arith.cmpi eq, %36, %45 : vector<128x128xi32>
    %47 = arith.ori %44, %46 : vector<128x128xi1>
    %48 = arith.select %47, %35, %19 : vector<128x128xi1>, vector<128x128xf32>
    %c0_18 = arith.constant 0 : index
    %c0_19 = arith.constant 0 : index
    %49 = vector.load %arg8[%c0_18, %c0_19] : memref<128x128xf32, #tpu.memory_space<vmem>>, vector<128x128xf32>
    tpu.vector_store %arg8[%c0_18, %c0_19], %48 {strides = array<i32>} : memref<128x128xf32, #tpu.memory_space<vmem>>, vector<128x128xf32>,
    return
  }
  func.func @transform_0(%arg0: i32) -> (i32, i32) {
    %c0_i32 = arith.constant 0 : i32
    %c0_i32_0 = arith.constant 0 : i32
    return %arg0, %c0_i32 : i32, i32
  }
  func.func @transform_1(%arg0: i32) -> (i32, i32) {
    %c0_i32 = arith.constant 0 : i32
    %c0_i32_0 = arith.constant 0 : i32
    %c0_i32_1 = arith.constant 0 : i32
    return %c0_i32, %c0_i32_0 : i32, i32
  }
  func.func @transform_2(%arg0: i32) -> (i32, i32) {
    %c0_i32 = arith.constant 0 : i32
    %c0_i32_0 = arith.constant 0 : i32
    %c0_i32_1 = arith.constant 0 : i32
    return %c0_i32, %c0_i32_0 : i32, i32
  }
  func.func @transform_3(%arg0: i32) -> (i32, i32) {
    %c0_i32 = arith.constant 0 : i32
    %c0_i32_0 = arith.constant 0 : i32
    %c0_i32_1 = arith.constant 0 : i32
    return %c0_i32, %c0_i32_0 : i32, i32
  }
  func.func @transform_4(%arg0: i32) -> (i32, i32) {
    %c0_i32 = arith.constant 0 : i32
    %c0_i32_0 = arith.constant 0 : i32
    %c0_i32_1 = arith.constant 0 : i32
    return %c0_i32, %c0_i32_0 : i32, i32
  }
  func.func @transform_5(%arg0: i32) -> (i32, i32) {
    %c0_i32 = arith.constant 0 : i32
    %c0_i32_0 = arith.constant 0 : i32
    %c0_i32_1 = arith.constant 0 : i32
    return %c0_i32, %c0_i32_0 : i32, i32
  }
  func.func @transform_6(%arg0: i32) -> (i32, i32) {
    %c0_i32 = arith.constant 0 : i32
    %c0_i32_0 = arith.constant 0 : i32
    %c0_i32_1 = arith.constant 0 : i32
    return %c0_i32, %c0_i32_0 : i32, i32
  }
  func.func @transform_7(%arg0: i32) -> (i32, i32) {
    %c0_i32 = arith.constant 0 : i32
    %c0_i32_0 = arith.constant 0 : i32
    return %arg0, %c0_i32 : i32, i32
  }
}

</mosaic_0001>

<llo_original>
// kernel: tpu_custom_call.1
$region0: #{tpu_custom_call.1}
  #allocation0 [shape = 'u32[]', space=smem, size = 0x4, offset = 0x4, fixed_abs, tag = 'smem constant byte address 0x4 - core index']
  #allocation1 [shape = 'u32[72,128]{1,0:T(1,128)}', space=vmem, size = 0x9000, scoped, tag = 'internal scratch']
  %s0 = inlined_call_operand.vmem [shape: bf16[128,16], index: 0, kind: input, shape index: {}]
  %s1 = inlined_call_operand.vmem [shape: bf16[16,64], index: 1, kind: input, shape index: {}]
  %s2 = inlined_call_operand.vmem [shape: f32[1,64], index: 2, kind: input, shape index: {}]
  %s3 = inlined_call_operand.vmem [shape: bf16[64,64], index: 3, kind: input, shape index: {}]
  %s4 = inlined_call_operand.vmem [shape: f32[1,64], index: 4, kind: input, shape index: {}]
  %s5 = inlined_call_operand.vmem [shape: bf16[64,128], index: 5, kind: input, shape index: {}]
  %s6 = inlined_call_operand.vmem [shape: f32[1,128], index: 6, kind: input, shape index: {}]
  %s7 = inlined_call_operand.hbm [shape: f32[128,128], index: 7, kind: output, shape index: {}]
  %s8 = sld [smem:[#allocation0]]
  $region38: #{tpu_custom_call.1} parent=0
    _
  %s10 = ssub.s32 1, %s8
  %s11 = scalar_select 0, %s10, %s8
  $region1: #{tpu_custom_call.1} parent=0
    #allocation2 [shape = 'u8[65536]{0}', space=vmem, size = 0x10000, scoped, tag = 'output window, operand 0, single buffered']
    #allocation3 [shape = 's32[1]{0}', space=sflag, size = 0x4, scoped, tag = 'scoped memory for tpu_custom_call.1']
    %12 = vsyncpa [#allocation3], 0
    // Predicated region
    $region2: #{tpu_custom_call.1} parent=1 // pred_check
      _
    $region3: #{tpu_custom_call.1} parent=1 // pred_check_branch
      %14 = sbr.rel (0) target = $region5
    $region4: #{tpu_custom_call.1} parent=1 // pred_region
      _
    $region5: #{tpu_custom_call.1} parent=1 // pred_fallthru
      _
    // Predicated region
    $region6: #{tpu_custom_call.1} parent=1 // pred_check
      _
    $region7: #{tpu_custom_call.1} parent=1 // pred_check_branch
      %16 = sbr.rel (0) target = $region9
    $region8: #{tpu_custom_call.1} parent=1 // pred_region
      _
    $region9: #{tpu_custom_call.1} parent=1 // pred_fallthru
      _
    // Predicated region
    $region10: #{tpu_custom_call.1} parent=1 // pred_check
      _
    $region11: #{tpu_custom_call.1} parent=1 // pred_check_branch
      %18 = sbr.rel (0) target = $region13
    $region12: #{tpu_custom_call.1} parent=1 // pred_region
      _
    $region13: #{tpu_custom_call.1} parent=1 // pred_fallthru
      _
    // Predicated region
    $region14: #{tpu_custom_call.1} parent=1 // pred_check
      _
    $region15: #{tpu_custom_call.1} parent=1 // pred_check_branch
      %20 = sbr.rel (0) target = $region17
    $region16: #{tpu_custom_call.1} parent=1 // pred_region
      _
    $region17: #{tpu_custom_call.1} parent=1 // pred_fallthru
      _
    // Predicated region
    $region18: #{tpu_custom_call.1} parent=1 // pred_check
      _
    $region19: #{tpu_custom_call.1} parent=1 // pred_check_branch
      %22 = sbr.rel (0) target = $region21
    $region20: #{tpu_custom_call.1} parent=1 // pred_region
      _
    $region21: #{tpu_custom_call.1} parent=1 // pred_fallthru
      _
    // Predicated region
    $region22: #{tpu_custom_call.1} parent=1 // pred_check
      _
    $region23: #{tpu_custom_call.1} parent=1 // pred_check_branch
      %24 = sbr.rel (0) target = $region25
    $region24: #{tpu_custom_call.1} parent=1 // pred_region
      _
    $region25: #{tpu_custom_call.1} parent=1 // pred_fallthru
      _
    // Predicated region
    $region26: #{tpu_custom_call.1} parent=1 // pred_check
      _
    $region27: #{tpu_custom_call.1} parent=1 // pred_check_branch
      %26 = sbr.rel (0) target = $region29
    $region28: #{tpu_custom_call.1} parent=1 // pred_region
      _
    $region29: #{tpu_custom_call.1} parent=1 // pred_fallthru
      _
    %v28 = vld [vmem:[%s0] sm:$0xf]
    %v29 = vld [vmem:[%s0 + $0x4] sm:$0xf]
    %v30 = vld [vmem:[%s0 + $0x8] sm:$0xf]
    %v31 = vld [vmem:[%s0 + $0xc] sm:$0xf]
    %v32 = vld [vmem:[%s0 + $0x10] sm:$0xf]
    %v33 = vld [vmem:[%s0 + $0x14] sm:$0xf]
    %v34 = vld [vmem:[%s0 + $0x18] sm:$0xf]
    %v35 = vld [vmem:[%s0 + $0x1c] sm:$0xf]
    %v36 = vld [vmem:[%s0 + $0x20] sm:$0xf]
    %v37 = vld [vmem:[%s0 + $0x24] sm:$0xf]
    %v38 = vld [vmem:[%s0 + $0x28] sm:$0xf]
    %v39 = vld [vmem:[%s0 + $0x2c] sm:$0xf]
    %v40 = vld [vmem:[%s0 + $0x30] sm:$0xf]
    %v41 = vld [vmem:[%s0 + $0x34] sm:$0xf]
    %v42 = vld [vmem:[%s0 + $0x38] sm:$0xf]
    %v43 = vld [vmem:[%s0 + $0x3c] sm:$0xf]
    %v44 = vld [vmem:[%s1] sm:$0xf]
    %v45 = vld [vmem:[%s1 + $0x4] sm:$0xf]
    %v46 = vld [vmem:[%s2] sm:$0x1]
    %v48 = vperm.slane %v46, 0
    %v66 = vunpack.c.l.b16 %v28
    %v67 = vunpack.c.l.b16 %v29
    %v68 = vunpack.c.l.b16 %v30
    %v69 = vunpack.c.l.b16 %v31
    %v70 = vunpack.c.l.b16 %v32
    %v71 = vunpack.c.l.b16 %v33
    %v72 = vunpack.c.l.b16 %v34
    %v73 = vunpack.c.l.b16 %v35
    %v74 = vunpack.c.l.b16 %v36
    %v75 = vunpack.c.l.b16 %v37
    %v76 = vunpack.c.l.b16 %v38
    %v77 = vunpack.c.l.b16 %v39
    %v78 = vunpack.c.l.b16 %v40
    %v79 = vunpack.c.l.b16 %v41
    %v80 = vunpack.c.l.b16 %v42
    %v81 = vunpack.c.l.b16 %v43
    %v82 = vpack.c.b16 %v67, %v66
    %v83 = vpack.c.b16 %v69, %v68
    %v84 = vpack.c.b16 %v71, %v70
    %v85 = vpack.c.b16 %v73, %v72
    %v86 = vpack.c.b16 %v75, %v74
    %v87 = vpack.c.b16 %v77, %v76
    %v88 = vpack.c.b16 %v79, %v78
    %v89 = vpack.c.b16 %v81, %v80
    %v92 = vunpack.c.l.b16 %v44
    %v93 = vunpack.c.l.b16 %v45
    %v94 = vpack.c.b16 %v93, %v92
    %vm96 = vcmask 130048
    %v98 = vsel %vm96, %v82, 0
    %v101 = vsel %vm96, %v83, 0
    %v104 = vsel %vm96, %v84, 0
    %v107 = vsel %vm96, %v85, 0
    %v110 = vsel %vm96, %v86, 0
    %v113 = vsel %vm96, %v87, 0
    %v116 = vsel %vm96, %v88, 0
    %v119 = vsel %vm96, %v89, 0
    %121 = vmatpush.bf16.msra.mxu0 0
    %122 = vmatpush.bf16.msra.mxu0 0
    %123 = vmatpush.bf16.msra.mxu0 0
    %124 = vmatpush.bf16.msra.mxu0 0
    %125 = vmatpush.bf16.msra.mxu0 0
    %126 = vmatpush.bf16.msra.mxu0 0
    %127 = vmatpush.bf16.msra.mxu0 0
    %128 = vmatpush.bf16.msra.mxu0 %v94
    %129 = vmatmul.bf16.gmra.mxu0 %v98
    %v130 = vpop.f32.mrf.mxu0
    %v131 = vadd.f32 %v48, %v130
    %v132 = vpop.f32.mrf.mxu0
    %v133 = vadd.f32 %v48, %v132
    %134 = vmatmul.bf16.gmra.mxu0 %v101
    %v135 = vpop.f32.mrf.mxu0
    %v136 = vadd.f32 %v48, %v135
    %v137 = vpop.f32.mrf.mxu0
    %v138 = vadd.f32 %v48, %v137
    %139 = vmatmul.bf16.gmra.mxu0 %v104
    %v140 = vpop.f32.mrf.mxu0
    %v141 = vadd.f32 %v48, %v140
    %v142 = vpop.f32.mrf.mxu0
    %v143 = vadd.f32 %v48, %v142
    %144 = vmatmul.bf16.gmra.mxu0 %v107
    %v145 = vpop.f32.mrf.mxu0
    %v146 = vadd.f32 %v48, %v145
    %v147 = vpop.f32.mrf.mxu0
    %v148 = vadd.f32 %v48, %v147
    %149 = vmatmul.bf16.gmra.mxu0 %v110
    %v150 = vpop.f32.mrf.mxu0
    %v151 = vadd.f32 %v48, %v150
    %v152 = vpop.f32.mrf.mxu0
    %v153 = vadd.f32 %v48, %v152
    %154 = vmatmul.bf16.gmra.mxu0 %v113
    %v155 = vpop.f32.mrf.mxu0
    %v156 = vadd.f32 %v48, %v155
    %v157 = vpop.f32.mrf.mxu0
    %v158 = vadd.f32 %v48, %v157
    %159 = vmatmul.bf16.gmra.mxu0 %v116
    %v160 = vpop.f32.mrf.mxu0
    %v161 = vadd.f32 %v48, %v160
    %v162 = vpop.f32.mrf.mxu0
    %v163 = vadd.f32 %v48, %v162
    %164 = vmatmul.bf16.gmra.mxu0 %v119
    %v165 = vpop.f32.mrf.mxu0
    %v166 = vadd.f32 %v48, %v165
    %v167 = vpop.f32.mrf.mxu0
    %v168 = vadd.f32 %v48, %v167
    %169 = vdwg.mxu0
    %v170 = vtanh.pop %v131
    %v171 = vtanh.pop %v133
    %v172 = vtanh.pop %v136
    %v173 = vtanh.pop %v138
    %v174 = vtanh.pop %v141
    %v175 = vtanh.pop %v143
    %v176 = vtanh.pop %v146
    %v177 = vtanh.pop %v148
    %v178 = vtanh.pop %v151
    %v179 = vtanh.pop %v153
    %v180 = vtanh.pop %v156
    %v181 = vtanh.pop %v158
    %v182 = vtanh.pop %v161
    %v183 = vtanh.pop %v163
    %v184 = vtanh.pop %v166
    %v185 = vtanh.pop %v168
    %v186 = vpack.c.bf16 %v171, %v170
    %v187 = vpack.c.bf16 %v173, %v172
    %v188 = vpack.c.bf16 %v175, %v174
    %v189 = vpack.c.bf16 %v177, %v176
    %v190 = vpack.c.bf16 %v179, %v178
    %v191 = vpack.c.bf16 %v181, %v180
    %v192 = vpack.c.bf16 %v183, %v182
    %v193 = vpack.c.bf16 %v185, %v184
    %v194 = vld [vmem:[%s3] sm:$0xf]
    %v195 = vld [vmem:[%s3 + $0x4] sm:$0xf]
    %v196 = vld [vmem:[%s3 + $0x8] sm:$0xf]
    %v197 = vld [vmem:[%s3 + $0xc] sm:$0xf]
    %v198 = vld [vmem:[%s3 + $0x10] sm:$0xf]
    %v199 = vld [vmem:[%s3 + $0x14] sm:$0xf]
    %v200 = vld [vmem:[%s3 + $0x18] sm:$0xf]
    %v201 = vld [vmem:[%s3 + $0x1c] sm:$0xf]
    %v202 = vld [vmem:[%s4] sm:$0x1]
    %v204 = vperm.slane %v202, 0
    %v214 = vunpack.c.l.b16 %v194
    %v215 = vunpack.c.l.b16 %v195
    %v216 = vunpack.c.l.b16 %v196
    %v217 = vunpack.c.l.b16 %v197
    %v218 = vunpack.c.l.b16 %v198
    %v219 = vunpack.c.l.b16 %v199
    %v220 = vunpack.c.l.b16 %v200
    %v221 = vunpack.c.l.b16 %v201
    %v222 = vpack.c.b16 %v215, %v214
    %v223 = vpack.c.b16 %v217, %v216
    %v224 = vpack.c.b16 %v219, %v218
    %v225 = vpack.c.b16 %v221, %v220
    %vm230 = vcmask 523264
    %v232 = vsel %vm230, %v186, 0
    %v235 = vsel %vm230, %v187, 0
    %v238 = vsel %vm230, %v188, 0
    %v241 = vsel %vm230, %v189, 0
    %v244 = vsel %vm230, %v190, 0
    %v247 = vsel %vm230, %v191, 0
    %v250 = vsel %vm230, %v192, 0
    %v253 = vsel %vm230, %v193, 0
    %255 = vmatpush.bf16.msra.mxu0 0
    %256 = vmatpush.bf16.msra.mxu0 0
    %257 = vmatpush.bf16.msra.mxu0 0
    %258 = vmatpush.bf16.msra.mxu0 0
    %259 = vmatpush.bf16.msra.mxu0 %v225
    %260 = vmatpush.bf16.msra.mxu0 %v224
    %261 = vmatpush.bf16.msra.mxu0 %v223
    %262 = vmatpush.bf16.msra.mxu0 %v222
    %263 = vmatmul.bf16.gmra.mxu0 %v232
    %v264 = vpop.f32.mrf.mxu0
    %v265 = vadd.f32 %v204, %v264
    %v266 = vpop.f32.mrf.mxu0
    %v267 = vadd.f32 %v204, %v266
    %268 = vmatmul.bf16.gmra.mxu0 %v235
    %v269 = vpop.f32.mrf.mxu0
    %v270 = vadd.f32 %v204, %v269
    %v271 = vpop.f32.mrf.mxu0
    %v272 = vadd.f32 %v204, %v271
    %273 = vmatmul.bf16.gmra.mxu0 %v238
    %v274 = vpop.f32.mrf.mxu0
    %v275 = vadd.f32 %v204, %v274
    %v276 = vpop.f32.mrf.mxu0
    %v277 = vadd.f32 %v204, %v276
    %278 = vmatmul.bf16.gmra.mxu0 %v241
    %v279 = vpop.f32.mrf.mxu0
    %v280 = vadd.f32 %v204, %v279
    %v281 = vpop.f32.mrf.mxu0
    %v282 = vadd.f32 %v204, %v281
    %283 = vmatmul.bf16.gmra.mxu0 %v244
    %v284 = vpop.f32.mrf.mxu0
    %v285 = vadd.f32 %v204, %v284
    %v286 = vpop.f32.mrf.mxu0
    %v287 = vadd.f32 %v204, %v286
    %288 = vmatmul.bf16.gmra.mxu0 %v247
    %v289 = vpop.f32.mrf.mxu0
    %v290 = vadd.f32 %v204, %v289
    %v291 = vpop.f32.mrf.mxu0
    %v292 = vadd.f32 %v204, %v291
    %293 = vmatmul.bf16.gmra.mxu0 %v250
    %v294 = vpop.f32.mrf.mxu0
    %v295 = vadd.f32 %v204, %v294
    %v296 = vpop.f32.mrf.mxu0
    %v297 = vadd.f32 %v204, %v296
    %298 = vmatmul.bf16.gmra.mxu0 %v253
    %v299 = vpop.f32.mrf.mxu0
    %v300 = vadd.f32 %v204, %v299
    %v301 = vpop.f32.mrf.mxu0
    %v302 = vadd.f32 %v204, %v301
    %303 = vdwg.mxu0
    %v304 = vtanh.pop %v265
    %v305 = vtanh.pop %v267
    %v306 = vtanh.pop %v270
    %v307 = vtanh.pop %v272
    %v308 = vtanh.pop %v275
    %v309 = vtanh.pop %v277
    %v310 = vtanh.pop %v280
    %v311 = vtanh.pop %v282
    %v312 = vtanh.pop %v285
    %v313 = vtanh.pop %v287
    %v314 = vtanh.pop %v290
    %v315 = vtanh.pop %v292
    %v316 = vtanh.pop %v295
    %v317 = vtanh.pop %v297
    %v318 = vtanh.pop %v300
    %v319 = vtanh.pop %v302
    %v320 = vpack.c.bf16 %v305, %v304
    %v321 = vpack.c.bf16 %v307, %v306
    %v322 = vpack.c.bf16 %v309, %v308
    %v323 = vpack.c.bf16 %v311, %v310
    %v324 = vpack.c.bf16 %v313, %v312
    %v325 = vpack.c.bf16 %v315, %v314
    %v326 = vpack.c.bf16 %v317, %v316
    %v327 = vpack.c.bf16 %v319, %v318
    %v328 = vld [vmem:[%s5] sm:$0xf]
    %v329 = vld [vmem:[%s5 + $0x4] sm:$0xf]
    %v330 = vld [vmem:[%s5 + $0x8] sm:$0xf]
    %v331 = vld [vmem:[%s5 + $0xc] sm:$0xf]
    %v332 = vld [vmem:[%s5 + $0x10] sm:$0xf]
    %v333 = vld [vmem:[%s5 + $0x14] sm:$0xf]
    %v334 = vld [vmem:[%s5 + $0x18] sm:$0xf]
    %v335 = vld [vmem:[%s5 + $0x1c] sm:$0xf]
    %v336 = vld [vmem:[%s6] sm:$0x1]
    %v338 = vperm.slane %v336, 0
    %v348 = vunpack.c.l.b16 %v328
    %v349 = vunpack.c.l.b16 %v329
    %v350 = vunpack.c.l.b16 %v330
    %v351 = vunpack.c.l.b16 %v331
    %v352 = vunpack.c.l.b16 %v332
    %v353 = vunpack.c.l.b16 %v333
    %v354 = vunpack.c.l.b16 %v334
    %v355 = vunpack.c.l.b16 %v335
    %v356 = vpack.c.b16 %v349, %v348
    %v357 = vpack.c.b16 %v351, %v350
    %v358 = vpack.c.b16 %v353, %v352
    %v359 = vpack.c.b16 %v355, %v354
    %v365 = vsel %vm230, %v320, 0
    %v368 = vsel %vm230, %v321, 0
    %v371 = vsel %vm230, %v322, 0
    %v374 = vsel %vm230, %v323, 0
    %v377 = vsel %vm230, %v324, 0
    %v380 = vsel %vm230, %v325, 0
    %v383 = vsel %vm230, %v326, 0
    %v386 = vsel %vm230, %v327, 0
    %388 = vmatpush.bf16.msra.mxu0 0
    %389 = vmatpush.bf16.msra.mxu0 0
    %390 = vmatpush.bf16.msra.mxu0 0
    %391 = vmatpush.bf16.msra.mxu0 0
    %392 = vmatpush.bf16.msra.mxu0 %v359
    %393 = vmatpush.bf16.msra.mxu0 %v358
    %394 = vmatpush.bf16.msra.mxu0 %v357
    %395 = vmatpush.bf16.msra.mxu0 %v356
    %396 = vmatmul.bf16.gmra.mxu0 %v365
    %v397 = vpop.f32.mrf.mxu0
    %v398 = vadd.f32 %v338, %v397
    %v399 = vpop.f32.mrf.mxu0
    %v400 = vadd.f32 %v338, %v399
    %401 = vmatmul.bf16.gmra.mxu0 %v368
    %v402 = vpop.f32.mrf.mxu0
    %v403 = vadd.f32 %v338, %v402
    %v404 = vpop.f32.mrf.mxu0
    %v405 = vadd.f32 %v338, %v404
    %406 = vmatmul.bf16.gmra.mxu0 %v371
    %v407 = vpop.f32.mrf.mxu0
    %v408 = vadd.f32 %v338, %v407
    %v409 = vpop.f32.mrf.mxu0
    %v410 = vadd.f32 %v338, %v409
    %411 = vmatmul.bf16.gmra.mxu0 %v374
    %v412 = vpop.f32.mrf.mxu0
    %v413 = vadd.f32 %v338, %v412
    %v414 = vpop.f32.mrf.mxu0
    %v415 = vadd.f32 %v338, %v414
    %416 = vmatmul.bf16.gmra.mxu0 %v377
    %v417 = vpop.f32.mrf.mxu0
    %v418 = vadd.f32 %v338, %v417
    %v419 = vpop.f32.mrf.mxu0
    %v420 = vadd.f32 %v338, %v419
    %421 = vmatmul.bf16.gmra.mxu0 %v380
    %v422 = vpop.f32.mrf.mxu0
    %v423 = vadd.f32 %v338, %v422
    %v424 = vpop.f32.mrf.mxu0
    %v425 = vadd.f32 %v338, %v424
    %426 = vmatmul.bf16.gmra.mxu0 %v383
    %v427 = vpop.f32.mrf.mxu0
    %v428 = vadd.f32 %v338, %v427
    %v429 = vpop.f32.mrf.mxu0
    %v430 = vadd.f32 %v338, %v429
    %431 = vmatmul.bf16.gmra.mxu0 %v386
    %v432 = vpop.f32.mrf.mxu0
    %v433 = vadd.f32 %v338, %v432
    %v434 = vpop.f32.mrf.mxu0
    %v435 = vadd.f32 %v338, %v434
    %436 = vdwg.mxu0
    %v437 = vmax.f32 %v398, 0.0
    %v438 = vmax.f32 %v400, 0.0
    %v439 = vmax.f32 %v403, 0.0
    %v440 = vmax.f32 %v405, 0.0
    %v441 = vmax.f32 %v408, 0.0
    %v442 = vmax.f32 %v410, 0.0
    %v443 = vmax.f32 %v413, 0.0
    %v444 = vmax.f32 %v415, 0.0
    %v445 = vmax.f32 %v418, 0.0
    %v446 = vmax.f32 %v420, 0.0
    %v447 = vmax.f32 %v423, 0.0
    %v448 = vmax.f32 %v425, 0.0
    %v449 = vmax.f32 %v428, 0.0
    %v450 = vmax.f32 %v430, 0.0
    %v451 = vmax.f32 %v433, 0.0
    %v452 = vmax.f32 %v435, 0.0
    %vm453 = vcmp.ne.f32.partialorder %v398, %v398
    %vm454 = vcmp.ne.f32.partialorder %v400, %v400
    %vm455 = vcmp.ne.f32.partialorder %v403, %v403
    %vm456 = vcmp.ne.f32.partialorder %v405, %v405
    %vm457 = vcmp.ne.f32.partialorder %v408, %v408
    %vm458 = vcmp.ne.f32.partialorder %v410, %v410
    %vm459 = vcmp.ne.f32.partialorder %v413, %v413
    %vm460 = vcmp.ne.f32.partialorder %v415, %v415
    %vm461 = vcmp.ne.f32.partialorder %v418, %v418
    %vm462 = vcmp.ne.f32.partialorder %v420, %v420
    %vm463 = vcmp.ne.f32.partialorder %v423, %v423
    %vm464 = vcmp.ne.f32.partialorder %v425, %v425
    %vm465 = vcmp.ne.f32.partialorder %v428, %v428
    %vm466 = vcmp.ne.f32.partialorder %v430, %v430
    %vm467 = vcmp.ne.f32.partialorder %v433, %v433
    %vm468 = vcmp.ne.f32.partialorder %v435, %v435
    %v469 = vadd.f32 %v398, 0.0
    %v470 = vadd.f32 %v400, 0.0
    %v471 = vadd.f32 %v403, 0.0
    %v472 = vadd.f32 %v405, 0.0
    %v473 = vadd.f32 %v408, 0.0
    %v474 = vadd.f32 %v410, 0.0
    %v475 = vadd.f32 %v413, 0.0
    %v476 = vadd.f32 %v415, 0.0
    %v477 = vadd.f32 %v418, 0.0
    %v478 = vadd.f32 %v420, 0.0
    %v479 = vadd.f32 %v423, 0.0
    %v480 = vadd.f32 %v425, 0.0
    %v481 = vadd.f32 %v428, 0.0
    %v482 = vadd.f32 %v430, 0.0
    %v483 = vadd.f32 %v433, 0.0
    %v484 = vadd.f32 %v435, 0.0
    %v485 = vand.u32 2147483647, %v398
    %v486 = vand.u32 2147483647, %v400
    %v487 = vand.u32 2147483647, %v403
    %v488 = vand.u32 2147483647, %v405
    %v489 = vand.u32 2147483647, %v408
    %v490 = vand.u32 2147483647, %v410
    %v491 = vand.u32 2147483647, %v413
    %v492 = vand.u32 2147483647, %v415
    %v493 = vand.u32 2147483647, %v418
    %v494 = vand.u32 2147483647, %v420
    %v495 = vand.u32 2147483647, %v423
    %v496 = vand.u32 2147483647, %v425
    %v497 = vand.u32 2147483647, %v428
    %v498 = vand.u32 2147483647, %v430
    %v499 = vand.u32 2147483647, %v433
    %v500 = vand.u32 2147483647, %v435
    %v501 = vsub.f32 0.0, %v485
    %v502 = vsub.f32 0.0, %v486
    %v503 = vsub.f32 0.0, %v487
    %v504 = vsub.f32 0.0, %v488
    %v505 = vsub.f32 0.0, %v489
    %v506 = vsub.f32 0.0, %v490
    %v507 = vsub.f32 0.0, %v491
    %v508 = vsub.f32 0.0, %v492
    %v509 = vsub.f32 0.0, %v493
    %v510 = vsub.f32 0.0, %v494
    %v511 = vsub.f32 0.0, %v495
    %v512 = vsub.f32 0.0, %v496
    %v513 = vsub.f32 0.0, %v497
    %v514 = vsub.f32 0.0, %v498
    %v515 = vsub.f32 0.0, %v499
    %v516 = vsub.f32 0.0, %v500
    %v517 = vmul.f32 %v501, 1.442695
    %v518 = vpow.pop %v517
    %v519 = vmul.f32 %v502, 1.442695
    %v520 = vpow.pop %v519
    %v521 = vmul.f32 %v503, 1.442695
    %v522 = vpow.pop %v521
    %v523 = vmul.f32 %v504, 1.442695
    %v524 = vpow.pop %v523
    %v525 = vmul.f32 %v505, 1.442695
    %v526 = vpow.pop %v525
    %v527 = vmul.f32 %v506, 1.442695
    %v528 = vpow.pop %v527
    %v529 = vmul.f32 %v507, 1.442695
    %v530 = vpow.pop %v529
    %v531 = vmul.f32 %v508, 1.442695
    %v532 = vpow.pop %v531
    %v533 = vmul.f32 %v509, 1.442695
    %v534 = vpow.pop %v533
    %v535 = vmul.f32 %v510, 1.442695
    %v536 = vpow.pop %v535
    %v537 = vmul.f32 %v511, 1.442695
    %v538 = vpow.pop %v537
    %v539 = vmul.f32 %v512, 1.442695
    %v540 = vpow.pop %v539
    %v541 = vmul.f32 %v513, 1.442695
    %v542 = vpow.pop %v541
    %v543 = vmul.f32 %v514, 1.442695
    %v544 = vpow.pop %v543
    %v545 = vmul.f32 %v515, 1.442695
    %v546 = vpow.pop %v545
    %v547 = vmul.f32 %v516, 1.442695
    %v548 = vpow.pop %v547
    %v549 = vadd.f32 %v518, 1.0
    %v550 = vlog2.pop %v549
    %v551 = vmul.f32 %v550, 0.6931472
    %v552 = vmul.f32 -0.5, %v518
    %v553 = vadd.f32 %v552, 1.0
    %v554 = vmul.f32 %v553, %v518
    %v555 = vand.u32 2147483647, %v518
    %vm556 = vcmp.lt.f32.partialorder %v555, 0.0004427343
    %v557 = vsel %vm556, %v554, %v551
    %v558 = vadd.f32 %v520, 1.0
    %v559 = vlog2.pop %v558
    %v560 = vmul.f32 %v559, 0.6931472
    %v561 = vmul.f32 -0.5, %v520
    %v562 = vadd.f32 %v561, 1.0
    %v563 = vmul.f32 %v562, %v520
    %v564 = vand.u32 2147483647, %v520
    %vm565 = vcmp.lt.f32.partialorder %v564, 0.0004427343
    %v566 = vsel %vm565, %v563, %v560
    %v567 = vadd.f32 %v522, 1.0
    %v568 = vlog2.pop %v567
    %v569 = vmul.f32 %v568, 0.6931472
    %v570 = vmul.f32 -0.5, %v522
    %v571 = vadd.f32 %v570, 1.0
    %v572 = vmul.f32 %v571, %v522
    %v573 = vand.u32 2147483647, %v522
    %vm574 = vcmp.lt.f32.partialorder %v573, 0.0004427343
    %v575 = vsel %vm574, %v572, %v569
    %v576 = vadd.f32 %v524, 1.0
    %v577 = vlog2.pop %v576
    %v578 = vmul.f32 %v577, 0.6931472
    %v579 = vmul.f32 -0.5, %v524
    %v580 = vadd.f32 %v579, 1.0
    %v581 = vmul.f32 %v580, %v524
    %v582 = vand.u32 2147483647, %v524
    %vm583 = vcmp.lt.f32.partialorder %v582, 0.0004427343
    %v584 = vsel %vm583, %v581, %v578
    %v585 = vadd.f32 %v526, 1.0
    %v586 = vlog2.pop %v585
    %v587 = vmul.f32 %v586, 0.6931472
    %v588 = vmul.f32 -0.5, %v526
    %v589 = vadd.f32 %v588, 1.0
    %v590 = vmul.f32 %v589, %v526
    %v591 = vand.u32 2147483647, %v526
    %vm592 = vcmp.lt.f32.partialorder %v591, 0.0004427343
    %v593 = vsel %vm592, %v590, %v587
    %v594 = vadd.f32 %v528, 1.0
    %v595 = vlog2.pop %v594
    %v596 = vmul.f32 %v595, 0.6931472
    %v597 = vmul.f32 -0.5, %v528
    %v598 = vadd.f32 %v597, 1.0
    %v599 = vmul.f32 %v598, %v528
    %v600 = vand.u32 2147483647, %v528
    %vm601 = vcmp.lt.f32.partialorder %v600, 0.0004427343
    %v602 = vsel %vm601, %v599, %v596
    %v603 = vadd.f32 %v530, 1.0
    %v604 = vlog2.pop %v603
    %v605 = vmul.f32 %v604, 0.6931472
    %v606 = vmul.f32 -0.5, %v530
    %v607 = vadd.f32 %v606, 1.0
    %v608 = vmul.f32 %v607, %v530
    %v609 = vand.u32 2147483647, %v530
    %vm610 = vcmp.lt.f32.partialorder %v609, 0.0004427343
    %v611 = vsel %vm610, %v608, %v605
    %v612 = vadd.f32 %v532, 1.0
    %v613 = vlog2.pop %v612
    %v614 = vmul.f32 %v613, 0.6931472
    %v615 = vmul.f32 -0.5, %v532
    %v616 = vadd.f32 %v615, 1.0
    %v617 = vmul.f32 %v616, %v532
    %v618 = vand.u32 2147483647, %v532
    %vm619 = vcmp.lt.f32.partialorder %v618, 0.0004427343
    %v620 = vsel %vm619, %v617, %v614
    %v621 = vadd.f32 %v534, 1.0
    %v622 = vlog2.pop %v621
    %v623 = vmul.f32 %v622, 0.6931472
    %v624 = vmul.f32 -0.5, %v534
    %v625 = vadd.f32 %v624, 1.0
    %v626 = vmul.f32 %v625, %v534
    %v627 = vand.u32 2147483647, %v534
    %vm628 = vcmp.lt.f32.partialorder %v627, 0.0004427343
    %v629 = vsel %vm628, %v626, %v623
    %v630 = vadd.f32 %v536, 1.0
    %v631 = vlog2.pop %v630
    %v632 = vmul.f32 %v631, 0.6931472
    %v633 = vmul.f32 -0.5, %v536
    %v634 = vadd.f32 %v633, 1.0
    %v635 = vmul.f32 %v634, %v536
    %v636 = vand.u32 2147483647, %v536
    %vm637 = vcmp.lt.f32.partialorder %v636, 0.0004427343
    %v638 = vsel %vm637, %v635, %v632
    %v639 = vadd.f32 %v538, 1.0
    %v640 = vlog2.pop %v639
    %v641 = vmul.f32 %v640, 0.6931472
    %v642 = vmul.f32 -0.5, %v538
    %v643 = vadd.f32 %v642, 1.0
    %v644 = vmul.f32 %v643, %v538
    %v645 = vand.u32 2147483647, %v538
    %vm646 = vcmp.lt.f32.partialorder %v645, 0.0004427343
    %v647 = vsel %vm646, %v644, %v641
    %v648 = vadd.f32 %v540, 1.0
    %v649 = vlog2.pop %v648
    %v650 = vmul.f32 %v649, 0.6931472
    %v651 = vmul.f32 -0.5, %v540
    %v652 = vadd.f32 %v651, 1.0
    %v653 = vmul.f32 %v652, %v540
    %v654 = vand.u32 2147483647, %v540
    %vm655 = vcmp.lt.f32.partialorder %v654, 0.0004427343
    %v656 = vsel %vm655, %v653, %v650
    %v657 = vadd.f32 %v542, 1.0
    %v658 = vlog2.pop %v657
    %v659 = vmul.f32 %v658, 0.6931472
    %v660 = vmul.f32 -0.5, %v542
    %v661 = vadd.f32 %v660, 1.0
    %v662 = vmul.f32 %v661, %v542
    %v663 = vand.u32 2147483647, %v542
    %vm664 = vcmp.lt.f32.partialorder %v663, 0.0004427343
    %v665 = vsel %vm664, %v662, %v659
    %v666 = vadd.f32 %v544, 1.0
    %v667 = vlog2.pop %v666
    %v668 = vmul.f32 %v667, 0.6931472
    %v669 = vmul.f32 -0.5, %v544
    %v670 = vadd.f32 %v669, 1.0
    %v671 = vmul.f32 %v670, %v544
    %v672 = vand.u32 2147483647, %v544
    %vm673 = vcmp.lt.f32.partialorder %v672, 0.0004427343
    %v674 = vsel %vm673, %v671, %v668
    %v675 = vadd.f32 %v546, 1.0
    %v676 = vlog2.pop %v675
    %v677 = vmul.f32 %v676, 0.6931472
    %v678 = vmul.f32 -0.5, %v546
    %v679 = vadd.f32 %v678, 1.0
    %v680 = vmul.f32 %v679, %v546
    %v681 = vand.u32 2147483647, %v546
    %vm682 = vcmp.lt.f32.partialorder %v681, 0.0004427343
    %v683 = vsel %vm682, %v680, %v677
    %v684 = vadd.f32 %v548, 1.0
    %v685 = vlog2.pop %v684
    %v686 = vmul.f32 %v685, 0.6931472
    %v687 = vmul.f32 -0.5, %v548
    %v688 = vadd.f32 %v687, 1.0
    %v689 = vmul.f32 %v688, %v548
    %v690 = vand.u32 2147483647, %v548
    %vm691 = vcmp.lt.f32.partialorder %v690, 0.0004427343
    %v692 = vsel %vm691, %v689, %v686
    %v693 = vadd.f32 %v437, %v557
    %v694 = vadd.f32 %v438, %v566
    %v695 = vadd.f32 %v439, %v575
    %v696 = vadd.f32 %v440, %v584
    %v697 = vadd.f32 %v441, %v593
    %v698 = vadd.f32 %v442, %v602
    %v699 = vadd.f32 %v443, %v611
    %v700 = vadd.f32 %v444, %v620
    %v701 = vadd.f32 %v445, %v629
    %v702 = vadd.f32 %v446, %v638
    %v703 = vadd.f32 %v447, %v647
    %v704 = vadd.f32 %v448, %v656
    %v705 = vadd.f32 %v449, %v665
    %v706 = vadd.f32 %v450, %v674
    %v707 = vadd.f32 %v451, %v683
    %v708 = vadd.f32 %v452, %v692
    %v709 = vsel %vm453, %v469, %v693
    %v710 = vsel %vm454, %v470, %v694
    %v711 = vsel %vm455, %v471, %v695
    %v712 = vsel %vm456, %v472, %v696
    %v713 = vsel %vm457, %v473, %v697
    %v714 = vsel %vm458, %v474, %v698
    %v715 = vsel %vm459, %v475, %v699
    %v716 = vsel %vm460, %v476, %v700
    %v717 = vsel %vm461, %v477, %v701
    %v718 = vsel %vm462, %v478, %v702
    %v719 = vsel %vm463, %v479, %v703
    %v720 = vsel %vm464, %v480, %v704
    %v721 = vsel %vm465, %v481, %v705
    %v722 = vsel %vm466, %v482, %v706
    %v723 = vsel %vm467, %v483, %v707
    %v724 = vsel %vm468, %v484, %v708
    %v725 = vadd.f32 %v709, 1e-06
    %v726 = vadd.f32 %v710, 1e-06
    %v727 = vadd.f32 %v711, 1e-06
    %v728 = vadd.f32 %v712, 1e-06
    %v729 = vadd.f32 %v713, 1e-06
    %v730 = vadd.f32 %v714, 1e-06
    %v731 = vadd.f32 %v715, 1e-06
    %v732 = vadd.f32 %v716, 1e-06
    %v733 = vadd.f32 %v717, 1e-06
    %v734 = vadd.f32 %v718, 1e-06
    %v735 = vadd.f32 %v719, 1e-06
    %v736 = vadd.f32 %v720, 1e-06
    %v737 = vadd.f32 %v721, 1e-06
    %v738 = vadd.f32 %v722, 1e-06
    %v739 = vadd.f32 %v723, 1e-06
    %v740 = vadd.f32 %v724, 1e-06
    %v741 = vlaneseq
    %v742 = vand.u32 %v741, 127
    %vm743 = vcmp.eq.s32.totalorder %v742, 4
    %vm744 = vcmp.eq.s32.totalorder %v742, 9
    %vm745 = vmor %vm743, %vm744
    %vm746 = vcmp.eq.s32.totalorder %v742, 14
    %vm747 = vmor %vm745, %vm746
    %vm748 = vcmp.eq.s32.totalorder %v742, 19
    %vm749 = vmor %vm747, %vm748
    %v750 = vsel %vm749, %v725, %v398
    %v751 = vsel %vm749, %v726, %v400
    %v752 = vsel %vm749, %v727, %v403
    %v753 = vsel %vm749, %v728, %v405
    %v754 = vsel %vm749, %v729, %v408
    %v755 = vsel %vm749, %v730, %v410
    %v756 = vsel %vm749, %v731, %v413
    %v757 = vsel %vm749, %v732, %v415
    %v758 = vsel %vm749, %v733, %v418
    %v759 = vsel %vm749, %v734, %v420
    %v760 = vsel %vm749, %v735, %v423
    %v761 = vsel %vm749, %v736, %v425
    %v762 = vsel %vm749, %v737, %v428
    %v763 = vsel %vm749, %v738, %v430
    %v764 = vsel %vm749, %v739, %v433
    %v765 = vsel %vm749, %v740, %v435
    %766 = vst [vmem:[#allocation2] sm:$0xff] %v750
    %767 = vst [vmem:[#allocation2 + $0x8] sm:$0xff] %v751
    %768 = vst [vmem:[#allocation2 + $0x10] sm:$0xff] %v752
    %769 = vst [vmem:[#allocation2 + $0x18] sm:$0xff] %v753
    %770 = vst [vmem:[#allocation2 + $0x20] sm:$0xff] %v754
    %771 = vst [vmem:[#allocation2 + $0x28] sm:$0xff] %v755
    %772 = vst [vmem:[#allocation2 + $0x30] sm:$0xff] %v756
    %773 = vst [vmem:[#allocation2 + $0x38] sm:$0xff] %v757
    %774 = vst [vmem:[#allocation2 + $0x40] sm:$0xff] %v758
    %775 = vst [vmem:[#allocation2 + $0x48] sm:$0xff] %v759
    %776 = vst [vmem:[#allocation2 + $0x50] sm:$0xff] %v760
    %777 = vst [vmem:[#allocation2 + $0x58] sm:$0xff] %v761
    %778 = vst [vmem:[#allocation2 + $0x60] sm:$0xff] %v762
    %779 = vst [vmem:[#allocation2 + $0x68] sm:$0xff] %v763
    %780 = vst [vmem:[#allocation2 + $0x70] sm:$0xff] %v764
    %781 = vst [vmem:[#allocation2 + $0x78] sm:$0xff] %v765
    // Predicated region
    $region30: #{tpu_custom_call.1} parent=1 // pred_check
      _
    $region31: #{tpu_custom_call.1} parent=1 // pred_check_branch
      %783 = sbr.rel (0) target = $region33
    $region32: #{tpu_custom_call.1} parent=1 // pred_region
      %785 = vsyncadd [#allocation3], 0
      %s786 = sshll.u32 [#allocation2], 4
      %s787 = int_to_ptr.vmem [resolvable:$true] %s786
      %s788 = sshll.u32 %s7, 4
      %s789 = int_to_ptr.hbm [resolvable:$true] %s788
      %794 = dma.vmem_to_hbm [thread:$0]  %s787, 2048, %s789, [#allocation3], 128, 128, 8
    $region33: #{tpu_custom_call.1} parent=1 // pred_fallthru
      _
    // Predicated region
    $region34: #{tpu_custom_call.1} parent=1 // pred_check
      _
    $region35: #{tpu_custom_call.1} parent=1 // pred_check_branch
      %796 = sbr.rel (0) target = $region37
    $region36: #{tpu_custom_call.1} parent=1 // pred_region
      %798 = dma.done [#allocation3], 2048
    $region37: #{tpu_custom_call.1} parent=1 // pred_fallthru
      _
    %799 = vsyncpa [#allocation3], 1

</llo_original>
